<compile_context>
chip_gen: v7x
topology: tpu7x:2x2x1
jax: 0.10.0
libtpu: 0.0.40
codegen_flags: <defaults>
</compile_context>

<pallas_src>
import math
import functools

import jax
import jax.numpy as jnp
from jax.experimental import pallas as pl
from jax.experimental.pallas import tpu as pltpu


def _tpu_vmem_capacity_bytes():
    """Physical VMEM bytes of the local TPU (conservative fallback: v7x 64 MiB)."""
    try:
        return int(pltpu.get_tpu_info().vmem_capacity_bytes)
    except Exception:
        return 64 * 1024 * 1024


def _mha_kernel(xf_ref, wq_ref, bq_ref, wkv_ref, bkv_ref, wp_ref, bp_ref,
                o_ref, kv_ref, q_ref, ctx_ref,
                *, num_heads, head_dim, q_tile, inv_scale):
    emb = num_heads * head_dim
    cdt = jnp.bfloat16
    t = pl.program_id(1)

    # ---- K/V projection: ONCE per batch row, persisted in VMEM scratch ----
    @pl.when(t == 0)
    def _():
        xf = xf_ref[0]                                            # (N, E) bf16
        kv = (jnp.dot(xf, wkv_ref[...],
                      preferred_element_type=jnp.float32) + bkv_ref[...])
        kv_ref[...] = kv.astype(kv_ref.dtype)                     # (N, 2E) bf16

    # ---- Q projection on this query tile only (sliced from resident block) ----
    qstart = pl.multiple_of(t * q_tile, q_tile)
    xq = xf_ref[0, pl.ds(qstart, q_tile), :]                      # (TQ, E) bf16
    q_ref[...] = ((jnp.dot(xq, wq_ref[...],
                           preferred_element_type=jnp.float32)
                   + bq_ref[...]) * inv_scale).astype(q_ref.dtype)

    # ---- Attention per head; context written at its lane offset ----
    for h in range(num_heads):                   # small static loop over heads
        lo = h * head_dim
        hi = lo + head_dim
        qh = q_ref[:, lo:hi]                                      # (TQ, d)
        kh = kv_ref[:, lo:hi]                                     # (N,  d)
        vh = kv_ref[:, emb + lo:emb + hi]                         # (N,  d)

        # energy = q @ k^T (1/sqrt(d) already folded into q)
        energy = jax.lax.dot_general(qh, kh, (((1,), (1,)), ((), ())),
                                     preferred_element_type=jnp.float32)  # (TQ, N)

        m = jnp.max(energy, axis=-1, keepdims=True)
        p = jnp.exp(energy - m)
        att = p * pl.reciprocal(jnp.sum(p, axis=-1, keepdims=True), approx=True)

        ctx = jnp.dot(att.astype(cdt), vh,
                      preferred_element_type=jnp.float32)          # (TQ, d)
        ctx_ref[:, lo:hi] = ctx.astype(ctx_ref.dtype)

    # ---- Single fused output projection (full-E contraction depth) ----
    out = (jnp.dot(ctx_ref[...], wp_ref[...],
                   preferred_element_type=jnp.float32) + bp_ref[...])      # (TQ, E)
    o_ref[0] = out.astype(o_ref.dtype)


def multi_head_attention(x, params, *, num_heads, q_tile=None,
                         out_dtype=jnp.float32):
    """x: (B, N, E) float32.  params: dict of nn.Linear-layout weights/biases."""
    B, N, E = x.shape
    assert E % num_heads == 0
    head_dim = E // num_heads
    inv_scale = 1.0 / math.sqrt(E // num_heads)

    vmem_cap = _tpu_vmem_capacity_bytes()
    # ~75% of physical VMEM: ~96 MiB on v5e/v6e (128 MiB), ~48 MiB on v7x (64 MiB).
    vmem_limit = int(vmem_cap * 3 // 4)
    if q_tile is None:
        # Bigger query tiles amortize per-step overhead and fill the 256-wide
        # MXU; stay at 128 when VMEM is tight (v7x, until keys are tiled).
        q_tile = 256 if vmem_cap >= 100 * 1024 * 1024 else 128
    TQ = min(q_tile, N)
    assert N % TQ == 0, "sequence length must be divisible by the query tile"
    T = N // TQ

    cdt = jnp.bfloat16                 # matmul operand dtype (f32 accumulate)

    # nn.Linear weights are (out, in); transpose to (in, out) so y = x @ W + b.
    wq_t = params["wq"].T.astype(cdt)                                          # (E, E)
    wkv_t = jnp.concatenate([params["wk"].T, params["wv"].T], axis=1).astype(cdt)  # (E, 2E)
    wp_t = params["wp"].T.astype(cdt)                                          # (E, E)
    bq = params["bq"].reshape(1, E).astype(jnp.float32)
    bkv = jnp.concatenate([params["bk"], params["bv"]]).reshape(1, 2 * E).astype(jnp.float32)
    bp = params["bp"].reshape(1, E).astype(jnp.float32)

    x_c = x.astype(cdt)

    kernel = functools.partial(_mha_kernel, num_heads=num_heads,
                               head_dim=head_dim, q_tile=TQ, inv_scale=inv_scale)

    const2 = lambda b, t: (0, 0)

    return pl.pallas_call(
        kernel,
        out_shape=jax.ShapeDtypeStruct((B, N, E), out_dtype),
        grid_spec=pltpu.PrefetchScalarGridSpec(
            num_scalar_prefetch=0,
            grid=(B, T),
            in_specs=[
                # Full sequence block: constant in t -> DMA'd once per batch
                # row, resident in VMEM, used for K/V (t==0) and query slices.
                pl.BlockSpec((1, N, E), lambda b, t: (b, 0, 0)),
                pl.BlockSpec((E, E), const2),          # W_q
                pl.BlockSpec((1, E), const2),          # b_q
                pl.BlockSpec((E, 2 * E), const2),      # W_kv (fused K|V)
                pl.BlockSpec((1, 2 * E), const2),      # b_kv
                pl.BlockSpec((E, E), const2),          # W_p (un-split, fused epilogue)
                pl.BlockSpec((1, E), const2),          # b_p
            ],
            out_specs=pl.BlockSpec((1, TQ, E), lambda b, t: (b, t, 0)),
            scratch_shapes=[
                pltpu.VMEM((N, 2 * E), cdt),   # persistent K|V per batch row
                pltpu.VMEM((TQ, E), cdt),      # Q tile (per-head ref slices)
                pltpu.VMEM((TQ, E), cdt),      # head-concatenated context
            ],
        ),
        compiler_params=pltpu.CompilerParams(
            # t reuses the K/V scratch sequentially -> "arbitrary"; B stays
            # "parallel" so megacore still shards independent work.
            dimension_semantics=("parallel", "arbitrary"),
            vmem_limit_bytes=vmem_limit,
        ),
    )(x_c, wq_t, bq, wkv_t, bkv, wp_t, bp)


def _init_params(key, emb_size):
    """Deterministic nn.Linear-style init (uniform(-1/sqrt(in), 1/sqrt(in)))."""
    bound = 1.0 / math.sqrt(emb_size)
    keys = jax.random.split(key, 8)
    def u(k, shape):
        return jax.random.uniform(k, shape, jnp.float32, -bound, bound)
    return {
        "wq": u(keys[0], (emb_size, emb_size)), "bq": u(keys[1], (emb_size,)),
        "wk": u(keys[2], (emb_size, emb_size)), "bk": u(keys[3], (emb_size,)),
        "wv": u(keys[4], (emb_size, emb_size)), "bv": u(keys[5], (emb_size,)),
        "wp": u(keys[6], (emb_size, emb_size)), "bp": u(keys[7], (emb_size,)),
    }


def _reference(x, params, num_heads):
    """Pure-JAX f32 reference replicating the PyTorch forward (eval mode, no mask)."""
    B, N, E = x.shape
    d = E // num_heads
    lin = lambda x_, w, b: jnp.einsum("bne,oe->bno", x_, w) + b
    split = lambda t: t.reshape(B, N, num_heads, d).transpose(0, 2, 1, 3)
    q = split(lin(x, params["wq"], params["bq"]))
    k = split(lin(x, params["wk"], params["bk"]))
    v = split(lin(x, params["wv"], params["bv"]))
    energy = jnp.einsum("bhqd,bhkd->bhqk", q, k) / math.sqrt(E // num_heads)
    att = jax.nn.softmax(energy, axis=-1)
    out = jnp.einsum("bhal,bhlv->bhav", att, v)
    out = out.transpose(0, 2, 1, 3).reshape(B, N, E)
    return lin(out, params["wp"], params["bp"])


if __name__ == "__main__":
    B, N, E, H = 2, 8, 32, 4   # batch, seq, emb_size, num_heads

    key = jax.random.PRNGKey(0)
    kx, kp = jax.random.split(key)
    x = jax.random.normal(kx, (B, N, E), jnp.float32)
    params = _init_params(kp, E)

    out = multi_head_attention(x, params, num_heads=H)
    out = jax.block_until_ready(out)

    ref = _reference(x, params, H)
    assert out.shape == (B, N, E)
    # bf16 matmul operands (f32 accumulation) -> tolerance looser than pure f32.
    assert jnp.allclose(out, ref, atol=5e-2, rtol=5e-2), "mismatch vs reference"

    print("KERNEL_OK")
</pallas_src>

<mosaic_0001>
module attributes {stable_mosaic.version = 11 : i64} {
  func.func @_mha_kernel(%arg0: i32, %arg1: i32, %arg2: memref<1x8x32xbf16, #tpu.memory_space<vmem>>, %arg3: memref<32x32xbf16, #tpu.memory_space<vmem>>, %arg4: memref<1x32xf32, #tpu.memory_space<vmem>>, %arg5: memref<32x64xbf16, #tpu.memory_space<vmem>>, %arg6: memref<1x64xf32, #tpu.memory_space<vmem>>, %arg7: memref<32x32xbf16, #tpu.memory_space<vmem>>, %arg8: memref<1x32xf32, #tpu.memory_space<vmem>>, %arg9: memref<1x8x32xf32, #tpu.memory_space<vmem>>, %arg10: memref<8x64xbf16, #tpu.memory_space<vmem>>, %arg11: memref<8x32xbf16, #tpu.memory_space<vmem>>, %arg12: memref<8x32xbf16, #tpu.memory_space<vmem>>) attributes {dimension_semantics = [#tpu.dimension_semantics<parallel>, #tpu.dimension_semantics<arbitrary>], iteration_bounds = array<i64: 2, 1>, scalar_prefetch = 0 : i64, scratch_operands = 3 : i64, tpu.core_type = #tpu.core_type<tc>, window_params = [{transform_indices = @transform_0, window_bounds = array<i64: 1, 8, 32>}, {pipeline_mode = #tpu.pipeline_mode<synchronous>, transform_indices = @transform_1, window_bounds = array<i64: 32, 32>}, {pipeline_mode = #tpu.pipeline_mode<synchronous>, transform_indices = @transform_2, window_bounds = array<i64: 1, 32>}, {pipeline_mode = #tpu.pipeline_mode<synchronous>, transform_indices = @transform_3, window_bounds = array<i64: 32, 64>}, {pipeline_mode = #tpu.pipeline_mode<synchronous>, transform_indices = @transform_4, window_bounds = array<i64: 1, 64>}, {pipeline_mode = #tpu.pipeline_mode<synchronous>, transform_indices = @transform_5, window_bounds = array<i64: 32, 32>}, {pipeline_mode = #tpu.pipeline_mode<synchronous>, transform_indices = @transform_6, window_bounds = array<i64: 1, 32>}, {transform_indices = @transform_7, window_bounds = array<i64: 1, 8, 32>}]} {
    %c0_i32 = arith.constant 0 : i32
    %0 = arith.cmpi eq, %arg1, %c0_i32 : i32
    %1 = arith.extui %0 : i1 to i32
    %c0_i32_0 = arith.constant 0 : i32
    %2 = arith.cmpi ne, %1, %c0_i32_0 : i32
    scf.if %2 {
      %c0_60 = arith.constant 0 : index
      %c0_61 = arith.constant 0 : index
      %c0_62 = arith.constant 0 : index
      %98 = vector.load %arg2[%c0_60, %c0_61, %c0_62] : memref<1x8x32xbf16, #tpu.memory_space<vmem>>, vector<1x8x32xbf16>
      %99 = vector.shape_cast %98 : vector<1x8x32xbf16> to vector<8x32xbf16>
      %c0_63 = arith.constant 0 : index
      %c0_64 = arith.constant 0 : index
      %100 = vector.load %arg5[%c0_63, %c0_64] : memref<32x64xbf16, #tpu.memory_space<vmem>>, vector<32x64xbf16>
      %cst_65 = arith.constant dense<0.000000e+00> : vector<8x64xf32>
      %101 = tpu.matmul %99, %100, %cst_65 {dimension_numbers = #tpu.dot_dimension_numbers<[1], [0], [0], [1], [0, 0, 1, 1], [], []>} : vector<8x32xbf16>, vector<32x64xbf16>, vector<8x64xf32> -> vector<8x64xf32>
      %c0_66 = arith.constant 0 : index
      %c0_67 = arith.constant 0 : index
      %102 = vector.load %arg6[%c0_66, %c0_67] : memref<1x64xf32, #tpu.memory_space<vmem>>, vector<1x64xf32>
      %103 = vector.broadcast %102 : vector<1x64xf32> to vector<8x64xf32>
      %104 = arith.addf %101, %103 : vector<8x64xf32>
      %105 = arith.truncf %104 : vector<8x64xf32> to vector<8x64xbf16>
      %c0_68 = arith.constant 0 : index
      %c0_69 = arith.constant 0 : index
      %106 = vector.load %arg10[%c0_68, %c0_69] : memref<8x64xbf16, #tpu.memory_space<vmem>>, vector<8x64xbf16>
      tpu.vector_store %arg10[%c0_68, %c0_69], %105 {strides = array<i32>} : memref<8x64xbf16, #tpu.memory_space<vmem>>, vector<8x64xbf16>,
    } else {
    }
    %c8_i32 = arith.constant 8 : i32
    %3 = arith.muli %arg1, %c8_i32 : i32
    %4 = tpu.assume_multiple %3, 8 : i32
    %c0 = arith.constant 0 : index
    %5 = arith.index_cast %4 : i32 to index
    %c0_1 = arith.constant 0 : index
    %6 = vector.load %arg2[%c0, %5, %c0_1] : memref<1x8x32xbf16, #tpu.memory_space<vmem>>, vector<1x8x32xbf16>
    %7 = vector.shape_cast %6 : vector<1x8x32xbf16> to vector<8x32xbf16>
    %c0_2 = arith.constant 0 : index
    %c0_3 = arith.constant 0 : index
    %8 = vector.load %arg3[%c0_2, %c0_3] : memref<32x32xbf16, #tpu.memory_space<vmem>>, vector<32x32xbf16>
    %cst = arith.constant dense<0.000000e+00> : vector<8x32xf32>
    %9 = tpu.matmul %7, %8, %cst {dimension_numbers = #tpu.dot_dimension_numbers<[1], [0], [0], [1], [0, 0, 1, 1], [], []>} : vector<8x32xbf16>, vector<32x32xbf16>, vector<8x32xf32> -> vector<8x32xf32>
    %c0_4 = arith.constant 0 : index
    %c0_5 = arith.constant 0 : index
    %10 = vector.load %arg4[%c0_4, %c0_5] : memref<1x32xf32, #tpu.memory_space<vmem>>, vector<1x32xf32>
    %11 = vector.broadcast %10 : vector<1x32xf32> to vector<8x32xf32>
    %12 = arith.addf %9, %11 : vector<8x32xf32>
    %cst_6 = arith.constant 0.353553385 : f32
    %13 = vector.broadcast %cst_6 : f32 to vector<8x32xf32>
    %14 = arith.mulf %12, %13 : vector<8x32xf32>
    %15 = arith.truncf %14 : vector<8x32xf32> to vector<8x32xbf16>
    %c0_7 = arith.constant 0 : index
    %c0_8 = arith.constant 0 : index
    %16 = vector.load %arg11[%c0_7, %c0_8] : memref<8x32xbf16, #tpu.memory_space<vmem>>, vector<8x32xbf16>
    tpu.vector_store %arg11[%c0_7, %c0_8], %15 {strides = array<i32>} : memref<8x32xbf16, #tpu.memory_space<vmem>>, vector<8x32xbf16>,
    %c0_9 = arith.constant 0 : index
    %c0_10 = arith.constant 0 : index
    %17 = vector.load %arg11[%c0_9, %c0_10] : memref<8x32xbf16, #tpu.memory_space<vmem>>, vector<8x8xbf16>
    %c0_11 = arith.constant 0 : index
    %c0_12 = arith.constant 0 : index
    %18 = vector.load %arg10[%c0_11, %c0_12] : memref<8x64xbf16, #tpu.memory_space<vmem>>, vector<8x8xbf16>
    %c0_13 = arith.constant 0 : index
    %c32 = arith.constant 32 : index
    %19 = vector.load %arg10[%c0_13, %c32] : memref<8x64xbf16, #tpu.memory_space<vmem>>, vector<8x8xbf16>
    %cst_14 = arith.constant dense<0.000000e+00> : vector<8x8xf32>
    %20 = tpu.matmul %17, %18, %cst_14 {dimension_numbers = #tpu.dot_dimension_numbers<[1], [1], [0], [0], [0, 0, 1, 0], [], []>} : vector<8x8xbf16>, vector<8x8xbf16>, vector<8x8xf32> -> vector<8x8xf32>
    %cst_15 = arith.constant dense<0xFF800000> : vector<8xf32>
    %21 = vector.multi_reduction <maximumf>, %20, %cst_15 [1] : vector<8x8xf32> to vector<8xf32>
    %22 = vector.shape_cast %21 : vector<8xf32> to vector<8x1xf32>
    %23 = vector.broadcast %22 : vector<8x1xf32> to vector<8x8xf32>
    %24 = arith.subf %20, %23 : vector<8x8xf32>
    %25 = math.exp %24 : vector<8x8xf32>
    %cst_16 = arith.constant dense<0.000000e+00> : vector<8xf32>
    %26 = vector.multi_reduction <add>, %25, %cst_16 [1] : vector<8x8xf32> to vector<8xf32>
    %27 = vector.shape_cast %26 : vector<8xf32> to vector<8x1xf32>
    %28 = tpu.reciprocal %27 {approx = true} : vector<8x1xf32> -> vector<8x1xf32>
    %29 = vector.broadcast %28 : vector<8x1xf32> to vector<8x8xf32>
    %30 = arith.mulf %25, %29 : vector<8x8xf32>
    %31 = arith.truncf %30 : vector<8x8xf32> to vector<8x8xbf16>
    %cst_17 = arith.constant dense<0.000000e+00> : vector<8x8xf32>
    %32 = tpu.matmul %31, %19, %cst_17 {dimension_numbers = #tpu.dot_dimension_numbers<[1], [0], [0], [1], [0, 0, 1, 1], [], []>} : vector<8x8xbf16>, vector<8x8xbf16>, vector<8x8xf32> -> vector<8x8xf32>
    %33 = arith.truncf %32 : vector<8x8xf32> to vector<8x8xbf16>
    %c0_18 = arith.constant 0 : index
    %c0_19 = arith.constant 0 : index
    %34 = vector.load %arg12[%c0_18, %c0_19] : memref<8x32xbf16, #tpu.memory_space<vmem>>, vector<8x8xbf16>
    tpu.vector_store %arg12[%c0_18, %c0_19], %33 {strides = array<i32>} : memref<8x32xbf16, #tpu.memory_space<vmem>>, vector<8x8xbf16>,
    %c0_20 = arith.constant 0 : index
    %c8 = arith.constant 8 : index
    %35 = vector.load %arg11[%c0_20, %c8] : memref<8x32xbf16, #tpu.memory_space<vmem>>, vector<8x8xbf16>
    %c0_21 = arith.constant 0 : index
    %c8_22 = arith.constant 8 : index
    %36 = vector.load %arg10[%c0_21, %c8_22] : memref<8x64xbf16, #tpu.memory_space<vmem>>, vector<8x8xbf16>
    %c0_23 = arith.constant 0 : index
    %c40 = arith.constant 40 : index
    %37 = vector.load %arg10[%c0_23, %c40] : memref<8x64xbf16, #tpu.memory_space<vmem>>, vector<8x8xbf16>
    %cst_24 = arith.constant dense<0.000000e+00> : vector<8x8xf32>
    %38 = tpu.matmul %35, %36, %cst_24 {dimension_numbers = #tpu.dot_dimension_numbers<[1], [1], [0], [0], [0, 0, 1, 0], [], []>} : vector<8x8xbf16>, vector<8x8xbf16>, vector<8x8xf32> -> vector<8x8xf32>
    %cst_25 = arith.constant dense<0xFF800000> : vector<8xf32>
    %39 = vector.multi_reduction <maximumf>, %38, %cst_25 [1] : vector<8x8xf32> to vector<8xf32>
    %40 = vector.shape_cast %39 : vector<8xf32> to vector<8x1xf32>
    %41 = vector.broadcast %40 : vector<8x1xf32> to vector<8x8xf32>
    %42 = arith.subf %38, %41 : vector<8x8xf32>
    %43 = math.exp %42 : vector<8x8xf32>
    %cst_26 = arith.constant dense<0.000000e+00> : vector<8xf32>
    %44 = vector.multi_reduction <add>, %43, %cst_26 [1] : vector<8x8xf32> to vector<8xf32>
    %45 = vector.shape_cast %44 : vector<8xf32> to vector<8x1xf32>
    %46 = tpu.reciprocal %45 {approx = true} : vector<8x1xf32> -> vector<8x1xf32>
    %47 = vector.broadcast %46 : vector<8x1xf32> to vector<8x8xf32>
    %48 = arith.mulf %43, %47 : vector<8x8xf32>
    %49 = arith.truncf %48 : vector<8x8xf32> to vector<8x8xbf16>
    %cst_27 = arith.constant dense<0.000000e+00> : vector<8x8xf32>
    %50 = tpu.matmul %49, %37, %cst_27 {dimension_numbers = #tpu.dot_dimension_numbers<[1], [0], [0], [1], [0, 0, 1, 1], [], []>} : vector<8x8xbf16>, vector<8x8xbf16>, vector<8x8xf32> -> vector<8x8xf32>
    %51 = arith.truncf %50 : vector<8x8xf32> to vector<8x8xbf16>
    %c0_28 = arith.constant 0 : index
    %c8_29 = arith.constant 8 : index
    %52 = vector.load %arg12[%c0_28, %c8_29] : memref<8x32xbf16, #tpu.memory_space<vmem>>, vector<8x8xbf16>
    tpu.vector_store %arg12[%c0_28, %c8_29], %51 {strides = array<i32>} : memref<8x32xbf16, #tpu.memory_space<vmem>>, vector<8x8xbf16>,
    %c0_30 = arith.constant 0 : index
    %c16 = arith.constant 16 : index
    %53 = vector.load %arg11[%c0_30, %c16] : memref<8x32xbf16, #tpu.memory_space<vmem>>, vector<8x8xbf16>
    %c0_31 = arith.constant 0 : index
    %c16_32 = arith.constant 16 : index
    %54 = vector.load %arg10[%c0_31, %c16_32] : memref<8x64xbf16, #tpu.memory_space<vmem>>, vector<8x8xbf16>
    %c0_33 = arith.constant 0 : index
    %c48 = arith.constant 48 : index
    %55 = vector.load %arg10[%c0_33, %c48] : memref<8x64xbf16, #tpu.memory_space<vmem>>, vector<8x8xbf16>
    %cst_34 = arith.constant dense<0.000000e+00> : vector<8x8xf32>
    %56 = tpu.matmul %53, %54, %cst_34 {dimension_numbers = #tpu.dot_dimension_numbers<[1], [1], [0], [0], [0, 0, 1, 0], [], []>} : vector<8x8xbf16>, vector<8x8xbf16>, vector<8x8xf32> -> vector<8x8xf32>
    %cst_35 = arith.constant dense<0xFF800000> : vector<8xf32>
    %57 = vector.multi_reduction <maximumf>, %56, %cst_35 [1] : vector<8x8xf32> to vector<8xf32>
    %58 = vector.shape_cast %57 : vector<8xf32> to vector<8x1xf32>
    %59 = vector.broadcast %58 : vector<8x1xf32> to vector<8x8xf32>
    %60 = arith.subf %56, %59 : vector<8x8xf32>
    %61 = math.exp %60 : vector<8x8xf32>
    %cst_36 = arith.constant dense<0.000000e+00> : vector<8xf32>
    %62 = vector.multi_reduction <add>, %61, %cst_36 [1] : vector<8x8xf32> to vector<8xf32>
    %63 = vector.shape_cast %62 : vector<8xf32> to vector<8x1xf32>
    %64 = tpu.reciprocal %63 {approx = true} : vector<8x1xf32> -> vector<8x1xf32>
    %65 = vector.broadcast %64 : vector<8x1xf32> to vector<8x8xf32>
    %66 = arith.mulf %61, %65 : vector<8x8xf32>
    %67 = arith.truncf %66 : vector<8x8xf32> to vector<8x8xbf16>
    %cst_37 = arith.constant dense<0.000000e+00> : vector<8x8xf32>
    %68 = tpu.matmul %67, %55, %cst_37 {dimension_numbers = #tpu.dot_dimension_numbers<[1], [0], [0], [1], [0, 0, 1, 1], [], []>} : vector<8x8xbf16>, vector<8x8xbf16>, vector<8x8xf32> -> vector<8x8xf32>
    %69 = arith.truncf %68 : vector<8x8xf32> to vector<8x8xbf16>
    %c0_38 = arith.constant 0 : index
    %c16_39 = arith.constant 16 : index
    %70 = vector.load %arg12[%c0_38, %c16_39] : memref<8x32xbf16, #tpu.memory_space<vmem>>, vector<8x8xbf16>
    tpu.vector_store %arg12[%c0_38, %c16_39], %69 {strides = array<i32>} : memref<8x32xbf16, #tpu.memory_space<vmem>>, vector<8x8xbf16>,
    %c0_40 = arith.constant 0 : index
    %c24 = arith.constant 24 : index
    %71 = vector.load %arg11[%c0_40, %c24] : memref<8x32xbf16, #tpu.memory_space<vmem>>, vector<8x8xbf16>
    %c0_41 = arith.constant 0 : index
    %c24_42 = arith.constant 24 : index
    %72 = vector.load %arg10[%c0_41, %c24_42] : memref<8x64xbf16, #tpu.memory_space<vmem>>, vector<8x8xbf16>
    %c0_43 = arith.constant 0 : index
    %c56 = arith.constant 56 : index
    %73 = vector.load %arg10[%c0_43, %c56] : memref<8x64xbf16, #tpu.memory_space<vmem>>, vector<8x8xbf16>
    %cst_44 = arith.constant dense<0.000000e+00> : vector<8x8xf32>
    %74 = tpu.matmul %71, %72, %cst_44 {dimension_numbers = #tpu.dot_dimension_numbers<[1], [1], [0], [0], [0, 0, 1, 0], [], []>} : vector<8x8xbf16>, vector<8x8xbf16>, vector<8x8xf32> -> vector<8x8xf32>
    %cst_45 = arith.constant dense<0xFF800000> : vector<8xf32>
    %75 = vector.multi_reduction <maximumf>, %74, %cst_45 [1] : vector<8x8xf32> to vector<8xf32>
    %76 = vector.shape_cast %75 : vector<8xf32> to vector<8x1xf32>
    %77 = vector.broadcast %76 : vector<8x1xf32> to vector<8x8xf32>
    %78 = arith.subf %74, %77 : vector<8x8xf32>
    %79 = math.exp %78 : vector<8x8xf32>
    %cst_46 = arith.constant dense<0.000000e+00> : vector<8xf32>
    %80 = vector.multi_reduction <add>, %79, %cst_46 [1] : vector<8x8xf32> to vector<8xf32>
    %81 = vector.shape_cast %80 : vector<8xf32> to vector<8x1xf32>
    %82 = tpu.reciprocal %81 {approx = true} : vector<8x1xf32> -> vector<8x1xf32>
    %83 = vector.broadcast %82 : vector<8x1xf32> to vector<8x8xf32>
    %84 = arith.mulf %79, %83 : vector<8x8xf32>
    %85 = arith.truncf %84 : vector<8x8xf32> to vector<8x8xbf16>
    %cst_47 = arith.constant dense<0.000000e+00> : vector<8x8xf32>
    %86 = tpu.matmul %85, %73, %cst_47 {dimension_numbers = #tpu.dot_dimension_numbers<[1], [0], [0], [1], [0, 0, 1, 1], [], []>} : vector<8x8xbf16>, vector<8x8xbf16>, vector<8x8xf32> -> vector<8x8xf32>
    %87 = arith.truncf %86 : vector<8x8xf32> to vector<8x8xbf16>
    %c0_48 = arith.constant 0 : index
    %c24_49 = arith.constant 24 : index
    %88 = vector.load %arg12[%c0_48, %c24_49] : memref<8x32xbf16, #tpu.memory_space<vmem>>, vector<8x8xbf16>
    tpu.vector_store %arg12[%c0_48, %c24_49], %87 {strides = array<i32>} : memref<8x32xbf16, #tpu.memory_space<vmem>>, vector<8x8xbf16>,
    %c0_50 = arith.constant 0 : index
    %c0_51 = arith.constant 0 : index
    %89 = vector.load %arg12[%c0_50, %c0_51] : memref<8x32xbf16, #tpu.memory_space<vmem>>, vector<8x32xbf16>
    %c0_52 = arith.constant 0 : index
    %c0_53 = arith.constant 0 : index
    %90 = vector.load %arg7[%c0_52, %c0_53] : memref<32x32xbf16, #tpu.memory_space<vmem>>, vector<32x32xbf16>
    %cst_54 = arith.constant dense<0.000000e+00> : vector<8x32xf32>
    %91 = tpu.matmul %89, %90, %cst_54 {dimension_numbers = #tpu.dot_dimension_numbers<[1], [0], [0], [1], [0, 0, 1, 1], [], []>} : vector<8x32xbf16>, vector<32x32xbf16>, vector<8x32xf32> -> vector<8x32xf32>
    %c0_55 = arith.constant 0 : index
    %c0_56 = arith.constant 0 : index
    %92 = vector.load %arg8[%c0_55, %c0_56] : memref<1x32xf32, #tpu.memory_space<vmem>>, vector<1x32xf32>
    %93 = vector.broadcast %92 : vector<1x32xf32> to vector<8x32xf32>
    %94 = arith.addf %91, %93 : vector<8x32xf32>
    %c0_57 = arith.constant 0 : index
    %c0_58 = arith.constant 0 : index
    %c0_59 = arith.constant 0 : index
    %95 = vector.load %arg9[%c0_57, %c0_58, %c0_59] : memref<1x8x32xf32, #tpu.memory_space<vmem>>, vector<1x8x32xf32>
    %96 = vector.shape_cast %95 : vector<1x8x32xf32> to vector<8x32xf32>
    %97 = vector.shape_cast %94 : vector<8x32xf32> to vector<1x8x32xf32>
    tpu.vector_store %arg9[%c0_57, %c0_58, %c0_59], %97 {strides = array<i32>} : memref<1x8x32xf32, #tpu.memory_space<vmem>>, vector<1x8x32xf32>,
    return
  }
  func.func @transform_0(%arg0: i32, %arg1: i32) -> (i32, i32, i32) {
    %c0_i32 = arith.constant 0 : i32
    %c0_i32_0 = arith.constant 0 : i32
    %c0_i32_1 = arith.constant 0 : i32
    return %arg0, %c0_i32, %c0_i32_0 : i32, i32, i32
  }
  func.func @transform_1(%arg0: i32, %arg1: i32) -> (i32, i32) {
    %c0_i32 = arith.constant 0 : i32
    %c0_i32_0 = arith.constant 0 : i32
    %c0_i32_1 = arith.constant 0 : i32
    return %c0_i32, %c0_i32_0 : i32, i32
  }
  func.func @transform_2(%arg0: i32, %arg1: i32) -> (i32, i32) {
    %c0_i32 = arith.constant 0 : i32
    %c0_i32_0 = arith.constant 0 : i32
    %c0_i32_1 = arith.constant 0 : i32
    return %c0_i32, %c0_i32_0 : i32, i32
  }
  func.func @transform_3(%arg0: i32, %arg1: i32) -> (i32, i32) {
    %c0_i32 = arith.constant 0 : i32
    %c0_i32_0 = arith.constant 0 : i32
    %c0_i32_1 = arith.constant 0 : i32
    return %c0_i32, %c0_i32_0 : i32, i32
  }
  func.func @transform_4(%arg0: i32, %arg1: i32) -> (i32, i32) {
    %c0_i32 = arith.constant 0 : i32
    %c0_i32_0 = arith.constant 0 : i32
    %c0_i32_1 = arith.constant 0 : i32
    return %c0_i32, %c0_i32_0 : i32, i32
  }
  func.func @transform_5(%arg0: i32, %arg1: i32) -> (i32, i32) {
    %c0_i32 = arith.constant 0 : i32
    %c0_i32_0 = arith.constant 0 : i32
    %c0_i32_1 = arith.constant 0 : i32
    return %c0_i32, %c0_i32_0 : i32, i32
  }
  func.func @transform_6(%arg0: i32, %arg1: i32) -> (i32, i32) {
    %c0_i32 = arith.constant 0 : i32
    %c0_i32_0 = arith.constant 0 : i32
    %c0_i32_1 = arith.constant 0 : i32
    return %c0_i32, %c0_i32_0 : i32, i32
  }
  func.func @transform_7(%arg0: i32, %arg1: i32) -> (i32, i32, i32) {
    %c0_i32 = arith.constant 0 : i32
    %c0_i32_0 = arith.constant 0 : i32
    return %arg0, %arg1, %c0_i32 : i32, i32, i32
  }
}

</mosaic_0001>

<llo_original>
// kernel: tpu_custom_call.1
$region0: #{tpu_custom_call.1}
  #allocation0 [shape = 'u32[]', space=smem, size = 0x4, offset = 0x4, fixed_abs, tag = 'smem constant byte address 0x4 - core index']
  #allocation1 [shape = 'u32[144,128]{1,0:T(1,128)}', space=vmem, size = 0x12000, scoped, tag = 'internal scratch']
  #allocation2 [shape = 'bf16[8,64]{1,0:T(8,128)(2,1)}', space=vmem, size = 0x800, scoped, tag = 'scratch operand']
  #allocation3 [shape = 'bf16[8,32]{1,0:T(8,128)(2,1)}', space=vmem, size = 0x800, scoped, tag = 'scratch operand']
  #allocation4 [shape = 'bf16[8,32]{1,0:T(8,128)(2,1)}', space=vmem, size = 0x800, scoped, tag = 'scratch operand']
  %s0 = inlined_call_operand.hbm [shape: bf16[2,8,32], index: 0, kind: input, shape index: {}]
  %s1 = inlined_call_operand.hbm [shape: bf16[32,32], index: 1, kind: input, shape index: {}]
  %s2 = inlined_call_operand.vmem [shape: f32[1,32], index: 2, kind: input, shape index: {}]
  %s3 = inlined_call_operand.hbm [shape: bf16[32,64], index: 3, kind: input, shape index: {}]
  %s4 = inlined_call_operand.vmem [shape: f32[1,64], index: 4, kind: input, shape index: {}]
  %s5 = inlined_call_operand.vmem [shape: bf16[32,32], index: 5, kind: input, shape index: {}]
  %s6 = inlined_call_operand.vmem [shape: f32[1,32], index: 6, kind: input, shape index: {}]
  %s7 = inlined_call_operand.hbm [shape: f32[2,8,32], index: 7, kind: output, shape index: {}]
  %s8 = sld [smem:[#allocation0]]
  $region77: #{tpu_custom_call.1} parent=0
    _
  %s10 = ssub.s32 1, %s8
  %s11 = scalar_select 0, %s10, %s8
  $region1: #{tpu_custom_call.1} parent=0
    #allocation5 [shape = 'u8[4096]{0}', space=vmem, size = 0x1000, scoped, tag = 'input window, operand 0']
    #allocation6 [shape = 's32[2]{0}', space=sflag, size = 0x8, scoped, tag = 'scoped memory for tpu_custom_call.1']
    #allocation7 [shape = 's32[2]{0}', space=sflag, size = 0x8, scoped, tag = 'scoped memory for tpu_custom_call.1']
    #allocation8 [shape = 'u8[8192]{0}', space=vmem, size = 0x2000, scoped, tag = 'input window, operand 1, single buffered']
    #allocation9 [shape = 's32[1]{0}', space=sflag, size = 0x4, scoped, tag = 'scoped memory for tpu_custom_call.1']
    #allocation10 [shape = 'u8[8192]{0}', space=vmem, size = 0x2000, scoped, tag = 'input window, operand 3, single buffered']
    #allocation11 [shape = 'u8[8192]{0}', space=vmem, size = 0x2000, scoped, tag = 'output window, operand 0']
    %12 = vsyncpa [#allocation6], 0
    %s13 = scalar_lea.sflag [#allocation6], 1
    %14 = vsyncpa %s13, 0
    %15 = vsyncpa [#allocation9], 0
    %16 = vsyncpa [#allocation7], 0
    %s17 = scalar_lea.sflag [#allocation7], 1
    %18 = vsyncpa %s17, 0
    loop: start=0, step=1, limit=4
    $region2: #{tpu_custom_call.1} parent=1 // loop_pre_header
      _
    $region3: #{tpu_custom_call.1} parent=1 // loop_header
      %s20 = sphi 0, %s24
      %p21 = scmp.ge.s32.totalorder %s20, 4
      %s27 = sphi 0, %s39
      %s28 = sphi 0, %s35
      %s29 = sphi 0, %s27
      %s30 = sphi 0, %s28
      %s31 = sphi 0, %s29
      %s32 = sphi 0, %s30
      %s42 = sphi 0, %s44
      %s45 = sphi 0, %s42
      %s46 = sphi 0, %s45
      %s62 = sphi 0, %s46
      %s66 = sphi 0, %s66
      %s68 = sphi 0, %s66
      %s69 = sphi 0, %s68
      %s83 = sphi 0, %s69
      %s87 = sphi 0, %s87
      %s89 = sphi 0, %s87
      %s90 = sphi 0, %s89
      %s104 = sphi 0, %s90
      %s108 = sphi 0, %s108
      %s110 = sphi 0, %s108
      %s111 = sphi 0, %s110
      %s125 = sphi 0, %s111
      %s129 = sphi 0, %s129
      %s131 = sphi 0, %s129
      %s132 = sphi 0, %s131
      %s146 = sphi 0, %s132
      %s150 = sphi 0, %s150
      %s152 = sphi 0, %s150
      %s153 = sphi 0, %s152
      %s167 = sphi 0, %s153
      %s171 = sphi 0, %s171
      %s173 = sphi 0, %s171
      %s174 = sphi 0, %s173
      %s188 = sphi 0, %s174
      %s196 = sphi 0, %s198
      %s199 = sphi 0, %s196
      %s200 = sphi 0, %s199
      %s216 = sphi 0, %s200
    $region4: #{tpu_custom_call.1} parent=1 // loop_header_branch
      %23 = sbr.rel (%p21) target = $region8
    $region5: #{tpu_custom_call.1} parent=1 // loop_body
      %s25 = ssub.s32 %s20, 1
      %s26 = ssub.s32 %s20, 2
      %s33 = sadd.s32 1, %s28
      %p34 = scmp.ge.s32.totalorder %s33, 1
      %s35 = scalar_select %p34, 0, %s33
      %s36 = sadd.s32 1, %s27
      %s37 = scalar_select %p34, %s36, %s27
      %p38 = scmp.ge.s32.totalorder %s37, 2
      %s39 = scalar_select %p38, 0, %s37
      %s40 = ssub.s32 %s27, %s39
      %p41 = scmp.eq.s32.totalorder %s40, 0
      %s43 = sadd.s32 %s42, 1
      %s44 = scalar_select %p41, %s42, %s43
      %p47 = pneg %p41
      %p48 = scmp.eq.s32.totalorder %s20, 1
      %p49 = por %p47, %p48
      %p50 = scmp.ne.s32.totalorder %s42, %s45
      %p51 = scmp.eq.s32.totalorder %s20, 0
      %p52 = por %p50, %p51
      %p53 = scmp.ne.s32.totalorder %s42, %s45
      %p54 = scmp.eq.s32.totalorder %s25, 1
      %p55 = por %p53, %p54
      %p56 = scmp.ne.s32.totalorder %s45, %s46
      %p57 = scmp.eq.s32.totalorder %s25, 0
      %p58 = por %p56, %p57
      %p59 = scmp.ne.s32.totalorder %s45, %s46
      %p60 = scmp.eq.s32.totalorder %s26, 1
      %p61 = por %p59, %p60
      %p63 = scmp.ne.s32.totalorder %s46, %s62
      %p64 = scmp.eq.s32.totalorder %s26, 0
      %p65 = por %p63, %p64
      %s67 = sadd.s32 %s66, 1
      %p70 = scmp.eq.s32.totalorder %s20, 1
      %p71 = scmp.ne.s32.totalorder %s66, %s68
      %p72 = scmp.eq.s32.totalorder %s20, 0
      %p73 = por %p71, %p72
      %p74 = scmp.ne.s32.totalorder %s66, %s68
      %p75 = scmp.eq.s32.totalorder %s25, 1
      %p76 = por %p74, %p75
      %p77 = scmp.ne.s32.totalorder %s68, %s69
      %p78 = scmp.eq.s32.totalorder %s25, 0
      %p79 = por %p77, %p78
      %p80 = scmp.ne.s32.totalorder %s68, %s69
      %p81 = scmp.eq.s32.totalorder %s26, 1
      %p82 = por %p80, %p81
      %p84 = scmp.ne.s32.totalorder %s69, %s83
      %p85 = scmp.eq.s32.totalorder %s26, 0
      %p86 = por %p84, %p85
      %s88 = sadd.s32 %s87, 1
      %p91 = scmp.eq.s32.totalorder %s20, 1
      %p92 = scmp.ne.s32.totalorder %s87, %s89
      %p93 = scmp.eq.s32.totalorder %s20, 0
      %p94 = por %p92, %p93
      %p95 = scmp.ne.s32.totalorder %s87, %s89
      %p96 = scmp.eq.s32.totalorder %s25, 1
      %p97 = por %p95, %p96
      %p98 = scmp.ne.s32.totalorder %s89, %s90
      %p99 = scmp.eq.s32.totalorder %s25, 0
      %p100 = por %p98, %p99
      %p101 = scmp.ne.s32.totalorder %s89, %s90
      %p102 = scmp.eq.s32.totalorder %s26, 1
      %p103 = por %p101, %p102
      %p105 = scmp.ne.s32.totalorder %s90, %s104
      %p106 = scmp.eq.s32.totalorder %s26, 0
      %p107 = por %p105, %p106
      %s109 = sadd.s32 %s108, 1
      %p112 = scmp.eq.s32.totalorder %s20, 1
      %p113 = scmp.ne.s32.totalorder %s108, %s110
      %p114 = scmp.eq.s32.totalorder %s20, 0
      %p115 = por %p113, %p114
      %p116 = scmp.ne.s32.totalorder %s108, %s110
      %p117 = scmp.eq.s32.totalorder %s25, 1
      %p118 = por %p116, %p117
      %p119 = scmp.ne.s32.totalorder %s110, %s111
      %p120 = scmp.eq.s32.totalorder %s25, 0
      %p121 = por %p119, %p120
      %p122 = scmp.ne.s32.totalorder %s110, %s111
      %p123 = scmp.eq.s32.totalorder %s26, 1
      %p124 = por %p122, %p123
      %p126 = scmp.ne.s32.totalorder %s111, %s125
      %p127 = scmp.eq.s32.totalorder %s26, 0
      %p128 = por %p126, %p127
      %s130 = sadd.s32 %s129, 1
      %p133 = scmp.eq.s32.totalorder %s20, 1
      %p134 = scmp.ne.s32.totalorder %s129, %s131
      %p135 = scmp.eq.s32.totalorder %s20, 0
      %p136 = por %p134, %p135
      %p137 = scmp.ne.s32.totalorder %s129, %s131
      %p138 = scmp.eq.s32.totalorder %s25, 1
      %p139 = por %p137, %p138
      %p140 = scmp.ne.s32.totalorder %s131, %s132
      %p141 = scmp.eq.s32.totalorder %s25, 0
      %p142 = por %p140, %p141
      %p143 = scmp.ne.s32.totalorder %s131, %s132
      %p144 = scmp.eq.s32.totalorder %s26, 1
      %p145 = por %p143, %p144
      %p147 = scmp.ne.s32.totalorder %s132, %s146
      %p148 = scmp.eq.s32.totalorder %s26, 0
      %p149 = por %p147, %p148
      %s151 = sadd.s32 %s150, 1
      %p154 = scmp.eq.s32.totalorder %s20, 1
      %p155 = scmp.ne.s32.totalorder %s150, %s152
      %p156 = scmp.eq.s32.totalorder %s20, 0
      %p157 = por %p155, %p156
      %p158 = scmp.ne.s32.totalorder %s150, %s152
      %p159 = scmp.eq.s32.totalorder %s25, 1
      %p160 = por %p158, %p159
      %p161 = scmp.ne.s32.totalorder %s152, %s153
      %p162 = scmp.eq.s32.totalorder %s25, 0
      %p163 = por %p161, %p162
      %p164 = scmp.ne.s32.totalorder %s152, %s153
      %p165 = scmp.eq.s32.totalorder %s26, 1
      %p166 = por %p164, %p165
      %p168 = scmp.ne.s32.totalorder %s153, %s167
      %p169 = scmp.eq.s32.totalorder %s26, 0
      %p170 = por %p168, %p169
      %s172 = sadd.s32 %s171, 1
      %p175 = scmp.eq.s32.totalorder %s20, 1
      %p176 = scmp.ne.s32.totalorder %s171, %s173
      %p177 = scmp.eq.s32.totalorder %s20, 0
      %p178 = por %p176, %p177
      %p179 = scmp.ne.s32.totalorder %s171, %s173
      %p180 = scmp.eq.s32.totalorder %s25, 1
      %p181 = por %p179, %p180
      %p182 = scmp.ne.s32.totalorder %s173, %s174
      %p183 = scmp.eq.s32.totalorder %s25, 0
      %p184 = por %p182, %p183
      %p185 = scmp.ne.s32.totalorder %s173, %s174
      %p186 = scmp.eq.s32.totalorder %s26, 1
      %p187 = por %p185, %p186
      %p189 = scmp.ne.s32.totalorder %s174, %s188
      %p190 = scmp.eq.s32.totalorder %s26, 0
      %p191 = por %p189, %p190
      %s192 = ssub.s32 %s27, %s39
      %s193 = ssub.s32 %s28, %s35
      %s194 = sor.u32 %s192, %s193
      %p195 = scmp.eq.s32.totalorder %s194, 0
      %s197 = sadd.s32 %s196, 1
      %s198 = scalar_select %p195, %s196, %s197
      %p201 = pneg %p195
      %p202 = scmp.eq.s32.totalorder %s20, 1
      %p203 = por %p201, %p202
      %p204 = scmp.ne.s32.totalorder %s196, %s199
      %p205 = scmp.eq.s32.totalorder %s20, 0
      %p206 = por %p204, %p205
      %p207 = scmp.ne.s32.totalorder %s196, %s199
      %p208 = scmp.eq.s32.totalorder %s25, 1
      %p209 = por %p207, %p208
      %p210 = scmp.ne.s32.totalorder %s199, %s200
      %p211 = scmp.eq.s32.totalorder %s25, 0
      %p212 = por %p210, %p211
      %p213 = scmp.ne.s32.totalorder %s199, %s200
      %p214 = scmp.eq.s32.totalorder %s26, 1
      %p215 = por %p213, %p214
      %p217 = scmp.ne.s32.totalorder %s200, %s216
      %p218 = scmp.eq.s32.totalorder %s26, 0
      %p219 = por %p217, %p218
      %p220 = scmp.le.s32.totalorder 1, %s20
      %p221 = scmp.lt.s32.totalorder %s20, 3
      %p222 = pnand %p220, %p221
      %p223 = pneg %p222
      // Predicated region
      $region9: #{tpu_custom_call.1} parent=5 // pred_check
        _
      $region10: #{tpu_custom_call.1} parent=5 // pred_check_branch
        %225 = sbr.rel (%p222) target = $region12
      $region11: #{tpu_custom_call.1} parent=5 // pred_region
        %s226 = ssub.s32 %s20, 1
        // Predicated region
        $region13: #{tpu_custom_call.1} parent=11 // pred_check
          %p227 = pneg %p79
        $region14: #{tpu_custom_call.1} parent=11 // pred_check_branch
          %229 = sbr.rel (%p227) target = $region16
        $region15: #{tpu_custom_call.1} parent=11 // pred_region
          %s231 = ssub.s32 256, 256
          %232 = vsyncadd [#allocation9], %s231
          %s233 = sshll.u32 [#allocation8], 4
          %s234 = int_to_ptr.vmem [resolvable:$true] %s233
          %239 = dma.hbm_to_vmem [thread:$0]  %s1, 256, %s234, [#allocation9], 64, 64, 4
        $region16: #{tpu_custom_call.1} parent=11 // pred_fallthru
          _
        // Predicated region
        $region17: #{tpu_custom_call.1} parent=11 // pred_check
          %p240 = pneg %p100
        $region18: #{tpu_custom_call.1} parent=11 // pred_check_branch
          %242 = sbr.rel (%p240) target = $region20
        $region19: #{tpu_custom_call.1} parent=11 // pred_region
          _
        $region20: #{tpu_custom_call.1} parent=11 // pred_fallthru
          _
        // Predicated region
        $region21: #{tpu_custom_call.1} parent=11 // pred_check
          %p243 = pneg %p121
        $region22: #{tpu_custom_call.1} parent=11 // pred_check_branch
          %245 = sbr.rel (%p243) target = $region24
        $region23: #{tpu_custom_call.1} parent=11 // pred_region
          %s247 = ssub.s32 256, 256
          %248 = vsyncadd [#allocation9], %s247
          %s249 = sshll.u32 [#allocation10], 4
          %s250 = int_to_ptr.vmem [resolvable:$true] %s249
          %255 = dma.hbm_to_vmem [thread:$0]  %s3, 256, %s250, [#allocation9], 64, 64, 4
        $region24: #{tpu_custom_call.1} parent=11 // pred_fallthru
          _
        // Predicated region
        $region25: #{tpu_custom_call.1} parent=11 // pred_check
          %p256 = pneg %p142
        $region26: #{tpu_custom_call.1} parent=11 // pred_check_branch
          %258 = sbr.rel (%p256) target = $region28
        $region27: #{tpu_custom_call.1} parent=11 // pred_region
          _
        $region28: #{tpu_custom_call.1} parent=11 // pred_fallthru
          _
        // Predicated region
        $region29: #{tpu_custom_call.1} parent=11 // pred_check
          %p259 = pneg %p163
        $region30: #{tpu_custom_call.1} parent=11 // pred_check_branch
          %261 = sbr.rel (%p259) target = $region32
        $region31: #{tpu_custom_call.1} parent=11 // pred_region
          _
        $region32: #{tpu_custom_call.1} parent=11 // pred_fallthru
          _
        // Predicated region
        $region33: #{tpu_custom_call.1} parent=11 // pred_check
          %p262 = pneg %p184
        $region34: #{tpu_custom_call.1} parent=11 // pred_check_branch
          %264 = sbr.rel (%p262) target = $region36
        $region35: #{tpu_custom_call.1} parent=11 // pred_region
          _
        $region36: #{tpu_custom_call.1} parent=11 // pred_fallthru
          _
      $region12: #{tpu_custom_call.1} parent=5 // pred_fallthru
        _
      %p265 = scmp.lt.s32.totalorder %s20, 2
      // Predicated region
      $region37: #{tpu_custom_call.1} parent=5 // pred_check
        %p266 = pneg %p265
      $region38: #{tpu_custom_call.1} parent=5 // pred_check_branch
        %268 = sbr.rel (%p266) target = $region40
      $region39: #{tpu_custom_call.1} parent=5 // pred_region
        // Predicated region
        $region41: #{tpu_custom_call.1} parent=39 // pred_check
          %p269 = pneg %p52
        $region42: #{tpu_custom_call.1} parent=39 // pred_check_branch
          %271 = sbr.rel (%p269) target = $region44
        $region43: #{tpu_custom_call.1} parent=39 // pred_region
          %s272 = sand.u32 %s42, 1
          %s273 = scalar_lea.sflag [#allocation6], %s272
          %s274 = sand.u32 %s42, 1
          %s275 = smul.addr %s274, 4
          %s276 = scalar_lea.vmem [#allocation5], %s275
          %s278 = ssub.s32 64, 64
          %279 = vsyncadd %s273, %s278
          %s280 = smul.addr %s27, 64
          %s281 = scalar_lea.hbm %s0, %s280
          %s283 = sshll.u32 %s276, 4
          %s284 = int_to_ptr.vmem [resolvable:$true] %s283
          %286 = dma.hbm_to_vmem [thread:$0]  %s281, 64, %s284, %s273
        $region44: #{tpu_custom_call.1} parent=39 // pred_fallthru
          _
      $region40: #{tpu_custom_call.1} parent=5 // pred_fallthru
        _
      %p287 = scmp.le.s32.totalorder 1, %s20
      %p288 = scmp.lt.s32.totalorder %s20, 3
      %p289 = pnand %p287, %p288
      %p290 = pneg %p289
      // Predicated region
      $region45: #{tpu_custom_call.1} parent=5 // pred_check
        _
      $region46: #{tpu_custom_call.1} parent=5 // pred_check_branch
        %292 = sbr.rel (%p289) target = $region48
      $region47: #{tpu_custom_call.1} parent=5 // pred_region
        %s293 = ssub.s32 %s20, 1
        %s294 = sand.u32 %s45, 1
        %s295 = scalar_lea.sflag [#allocation6], %s294
        %s296 = sand.u32 %s45, 1
        %s297 = smul.addr %s296, 4
        %s298 = scalar_lea.vmem [#allocation5], %s297
        // Predicated region
        $region49: #{tpu_custom_call.1} parent=47 // pred_check
          %p299 = pneg %p58
        $region50: #{tpu_custom_call.1} parent=47 // pred_check_branch
          %301 = sbr.rel (%p299) target = $region52
        $region51: #{tpu_custom_call.1} parent=47 // pred_region
          %302 = dma.done %s295, 64
        $region52: #{tpu_custom_call.1} parent=47 // pred_fallthru
          _
        // Predicated region
        $region53: #{tpu_custom_call.1} parent=47 // pred_check
          %p303 = pneg %p79
        $region54: #{tpu_custom_call.1} parent=47 // pred_check_branch
          %305 = sbr.rel (%p303) target = $region56
        $region55: #{tpu_custom_call.1} parent=47 // pred_region
          %306 = dma.done [#allocation9], 256
        $region56: #{tpu_custom_call.1} parent=47 // pred_fallthru
          _
        // Predicated region
        $region57: #{tpu_custom_call.1} parent=47 // pred_check
          %p307 = pneg %p121
        $region58: #{tpu_custom_call.1} parent=47 // pred_check_branch
          %309 = sbr.rel (%p307) target = $region60
        $region59: #{tpu_custom_call.1} parent=47 // pred_region
          %310 = dma.done [#allocation9], 256
        $region60: #{tpu_custom_call.1} parent=47 // pred_fallthru
          _
        %s311 = sand.u32 %s45, 1
        %s312 = scalar_lea.sflag [#allocation6], %s311
        %s313 = sand.u32 %s45, 1
        %s314 = smul.addr %s313, 4
        %s315 = scalar_lea.vmem [#allocation5], %s314
        %p316 = pneg %p58
        %p317 = pneg %p55
        %p318 = pneg %p79
        %p319 = pneg %p76
        %p320 = pneg %p100
        %p321 = pneg %p97
        %p322 = pneg %p121
        %p323 = pneg %p118
        %p324 = pneg %p142
        %p325 = pneg %p139
        %p326 = pneg %p163
        %p327 = pneg %p160
        %p328 = pneg %p184
        %p329 = pneg %p181
        %p330 = pneg %p212
        %p331 = pneg %p209
        %s332 = sand.u32 %s199, 1
        %s333 = scalar_lea.sflag [#allocation7], %s332
        %s334 = sand.u32 %s199, 1
        %s335 = smul.addr %s334, 8
        %s336 = scalar_lea.vmem [#allocation11], %s335
        %p338 = scmp.eq.s32.totalorder %s30, 0
        // Predicated region
        $region61: #{tpu_custom_call.1} parent=47 // pred_check
          %p339 = pneg %p338
        $region62: #{tpu_custom_call.1} parent=47 // pred_check_branch
          %341 = sbr.rel (%p339) target = $region64
        $region63: #{tpu_custom_call.1} parent=47 // pred_region
          %v342 = vld [vmem:[%s298] sm:$0xf]
          %v343 = vld [vmem:[#allocation10] sm:$0xf]
          %v344 = vld [vmem:[#allocation10 + $0x4] sm:$0xf]
          %v345 = vld [vmem:[#allocation10 + $0x8] sm:$0xf]
          %v346 = vld [vmem:[#allocation10 + $0xc] sm:$0xf]
          %v347 = vld [vmem:[%s4] sm:$0x1]
          %v349 = vlaneseq
          %v350 = vshrl.u32 %v349, 7
          %v351 = vsub.s32 0, %v350
          %v352 = vrot.slane %v347, %v351
          %v358 = vunpack.c.l.b16 %v343
          %v359 = vunpack.c.l.b16 %v344
          %v360 = vunpack.c.l.b16 %v345
          %v361 = vunpack.c.l.b16 %v346
          %v362 = vpack.c.b16 %v359, %v358
          %v363 = vpack.c.b16 %v361, %v360
          %vm366 = vcmask 261120
          %v368 = vsel %vm366, %v342, 0
          %370 = vmatprep.subr.bf16.mxu0 0
          %371 = vmatpush1.bf16.msra.mxu0 %v362
          %372 = vmatprep.subr.bf16.mxu0 0
          %373 = vmatpush1.bf16.msra.mxu0 %v363
          %374 = vmatprep.subr.bf16.mxu0 0
          %375 = vmatpush1.bf16.msra.mxu0 0
          %376 = vmatprep.subr.bf16.mxu0 0
          %377 = vmatpush1.bf16.msra.mxu0 0
          %378 = vmatprep.subr.bf16.mxu0 0
          %379 = vmatpush1.bf16.msra.mxu0 0
          %380 = vmatprep.subr.bf16.mxu0 0
          %381 = vmatpush1.bf16.msra.mxu0 0
          %382 = vmatprep.subr.bf16.mxu0 0
          %383 = vmatpush1.bf16.msra.mxu0 0
          %384 = vmatprep.subr.bf16.mxu0 0
          %385 = vmatpush1.bf16.msra.mxu0 0
          %386 = vmatprep.subr.bf16.mxu0 0
          %387 = vmatpush1.bf16.msra.mxu0 0
          %388 = vmatprep.subr.bf16.mxu0 0
          %389 = vmatpush1.bf16.msra.mxu0 0
          %390 = vmatprep.subr.bf16.mxu0 0
          %391 = vmatpush1.bf16.msra.mxu0 0
          %392 = vmatprep.subr.bf16.mxu0 0
          %393 = vmatpush1.bf16.msra.mxu0 0
          %394 = vmatprep.subr.bf16.mxu0 0
          %395 = vmatpush1.bf16.msra.mxu0 0
          %396 = vmatprep.subr.bf16.mxu0 0
          %397 = vmatpush1.bf16.msra.mxu0 0
          %398 = vmatprep.subr.bf16.mxu0 0
          %399 = vmatpush1.bf16.msra.mxu0 0
          %400 = vmatprep.subr.bf16.mxu0 0
          %401 = vmatpush1.bf16.msra.mxu0 0
          %402 = vmatprep.mubr.bf16.mxu0 0
          %403 = vmatmul.mubr.bf16.gmra.mrb[0].mxu0 %v368
          %v404 = vpop.f32.mrb[0].mxu0
          %v405 = vadd.f32 %v352, %v404
          %v406 = vpop.f32.mrb[0].mxu0
          %v407 = vpop.f32.mrb[0].mxu0
          %v408 = vpop.f32.mrb[0].mxu0
          %409 = vdwg.mxu0
          %v410 = vpack.c.bf16 %v405, %v405
          %vm411 = vcmask 519168
          %412 = vst.msk [vmem:[#allocation2] sm:$0xf] %vm411, %v410
        $region64: #{tpu_custom_call.1} parent=47 // pred_fallthru
          _
        %s413 = smul.u32 %s30, 8
        %s414 = sshra.s32 %s413, 3
        %s415 = sand.u32 %s413, 7
        %s416 = smul.addr %s414, 4
        %s417 = scalar_lea.vmem %s298, %s416 [#allocation5]
        %v418 = vld [vmem:[%s417] sm:$0xf]
        %v419 = vld [vmem:[#allocation8] sm:$0xf]
        %v420 = vld [vmem:[#allocation8 + $0x4] sm:$0xf]
        %v421 = vld [vmem:[#allocation8 + $0x8] sm:$0xf]
        %v422 = vld [vmem:[#allocation8 + $0xc] sm:$0xf]
        %v423 = vld [vmem:[%s2] sm:$0x1]
        %v425 = vlaneseq
        %v426 = vshrl.u32 %v425, 7
        %v427 = vsub.s32 0, %v426
        %v428 = vrot.slane %v423, %v427
        %v434 = vunpack.c.l.b16 %v419
        %v435 = vunpack.c.l.b16 %v420
        %v436 = vunpack.c.l.b16 %v421
        %v437 = vunpack.c.l.b16 %v422
        %v438 = vpack.c.b16 %v435, %v434
        %v439 = vpack.c.b16 %v437, %v436
        %vm442 = vcmask 261120
        %v444 = vsel %vm442, %v418, 0
        %446 = vmatprep.subr.bf16.mxu0 0
        %447 = vmatpush1.bf16.msra.mxu0 %v438
        %448 = vmatprep.subr.bf16.mxu0 0
        %449 = vmatpush1.bf16.msra.mxu0 %v439
        %450 = vmatprep.subr.bf16.mxu0 0
        %451 = vmatpush1.bf16.msra.mxu0 0
        %452 = vmatprep.subr.bf16.mxu0 0
        %453 = vmatpush1.bf16.msra.mxu0 0
        %454 = vmatprep.subr.bf16.mxu0 0
        %455 = vmatpush1.bf16.msra.mxu0 0
        %456 = vmatprep.subr.bf16.mxu0 0
        %457 = vmatpush1.bf16.msra.mxu0 0
        %458 = vmatprep.subr.bf16.mxu0 0
        %459 = vmatpush1.bf16.msra.mxu0 0
        %460 = vmatprep.subr.bf16.mxu0 0
        %461 = vmatpush1.bf16.msra.mxu0 0
        %462 = vmatprep.subr.bf16.mxu0 0
        %463 = vmatpush1.bf16.msra.mxu0 0
        %464 = vmatprep.subr.bf16.mxu0 0
        %465 = vmatpush1.bf16.msra.mxu0 0
        %466 = vmatprep.subr.bf16.mxu0 0
        %467 = vmatpush1.bf16.msra.mxu0 0
        %468 = vmatprep.subr.bf16.mxu0 0
        %469 = vmatpush1.bf16.msra.mxu0 0
        %470 = vmatprep.subr.bf16.mxu0 0
        %471 = vmatpush1.bf16.msra.mxu0 0
        %472 = vmatprep.subr.bf16.mxu0 0
        %473 = vmatpush1.bf16.msra.mxu0 0
        %474 = vmatprep.subr.bf16.mxu0 0
        %475 = vmatpush1.bf16.msra.mxu0 0
        %476 = vmatprep.subr.bf16.mxu0 0
        %477 = vmatpush1.bf16.msra.mxu0 0
        %478 = vmatprep.mubr.bf16.mxu0 0
        %479 = vmatmul.mubr.bf16.gmra.mrb[0].mxu0 %v444
        %v480 = vpop.f32.mrb[0].mxu0
        %v481 = vadd.f32 %v428, %v480
        %v482 = vpop.f32.mrb[0].mxu0
        %v483 = vpop.f32.mrb[0].mxu0
        %v484 = vpop.f32.mrb[0].mxu0
        %485 = vdwg.mxu0
        %v486 = vmul.f32 %v481, 0.35355338
        %v487 = vpack.c.bf16 %v486, %v486
        %vm488 = vcmask 257024
        %489 = vst.msk [vmem:[#allocation3] sm:$0xf] %vm488, %v487
        %v490 = vld [vmem:[#allocation3] sm:$0xf]
        %v491 = vld [vmem:[#allocation2] sm:$0xf]
        %vm492 = vcmask 64512
        %v494 = vsel %vm492, %v490, 0
        %v497 = vsel %vm492, %v491, 0
        %499 = vmatprep.subr.bf16.mxu0 0
        %500 = vmatpush1.bf16.xpose.msra.mxu0 %v497
        %501 = vmatprep.subr.bf16.mxu0 0
        %502 = vmatpush1.bf16.xpose.msra.mxu0 0
        %503 = vmatprep.subr.bf16.mxu0 0
        %504 = vmatpush1.bf16.xpose.msra.mxu0 0
        %505 = vmatprep.subr.bf16.mxu0 0
        %506 = vmatpush1.bf16.xpose.msra.mxu0 0
        %507 = vmatprep.subr.bf16.mxu0 0
        %508 = vmatpush1.bf16.xpose.msra.mxu0 0
        %509 = vmatprep.subr.bf16.mxu0 0
        %510 = vmatpush1.bf16.xpose.msra.mxu0 0
        %511 = vmatprep.subr.bf16.mxu0 0
        %512 = vmatpush1.bf16.xpose.msra.mxu0 0
        %513 = vmatprep.subr.bf16.mxu0 0
        %514 = vmatpush1.bf16.xpose.msra.mxu0 0
        %515 = vmatprep.subr.bf16.mxu0 0
        %516 = vmatpush1.bf16.xpose.msra.mxu0 0
        %517 = vmatprep.subr.bf16.mxu0 0
        %518 = vmatpush1.bf16.xpose.msra.mxu0 0
        %519 = vmatprep.subr.bf16.mxu0 0
        %520 = vmatpush1.bf16.xpose.msra.mxu0 0
        %521 = vmatprep.subr.bf16.mxu0 0
        %522 = vmatpush1.bf16.xpose.msra.mxu0 0
        %523 = vmatprep.subr.bf16.mxu0 0
        %524 = vmatpush1.bf16.xpose.msra.mxu0 0
        %525 = vmatprep.subr.bf16.mxu0 0
        %526 = vmatpush1.bf16.xpose.msra.mxu0 0
        %527 = vmatprep.subr.bf16.mxu0 0
        %528 = vmatpush1.bf16.xpose.msra.mxu0 0
        %529 = vmatprep.subr.bf16.mxu0 0
        %530 = vmatpush1.bf16.xpose.msra.mxu0 0
        %531 = vmatprep.mubr.bf16.mxu0 0
        %532 = vmatmul.mubr.bf16.gmra.mrb[0].mxu0 %v494
        %v533 = vpop.f32.mrb[0].mxu0
        %v534 = vadd.f32 0.0, %v533
        %v535 = vpop.f32.mrb[0].mxu0
        %v536 = vpop.f32.mrb[0].mxu0
        %v537 = vpop.f32.mrb[0].mxu0
        %538 = vdwg.mxu0
        %v539 = vsel %vm492, %v534, -inf
        %540 = vmax.xlane.f32.xlu0 %v539
        %v541 = vpop.xlane.xlu0 %540
        %v542 = vsub.f32 %v534, %v541
        %v543 = vmul.f32 %v542, 1.442695
        %v544 = vpow.pop %v543
        %v545 = vsel %vm492, %v544, 0.0
        %546 = vadd.xlane.f32.xlu0 %v545
        %v547 = vpop.xlane.xlu0 %546
        %v548 = vrcp.pop %v547
        %v549 = vmul.f32 %v544, %v548
        %v550 = vpack.c.bf16 %v549, %v549
        %v552 = vunpack.c.l.b16 %v491
        %v553 = vpack.c.b16 %v552, %v552
        %554 = vrot.lane.b32.xlu0 %v553, 96
        %v555 = vpop.permute.xlu0 %554
        %v557 = vsel %vm492, %v550, 0
        %vm559 = vcmask 1043456
        %v561 = vsel %vm559, %v555, 0
        %563 = vmatprep.subr.bf16.mxu0 0
        %564 = vmatpush1.bf16.msra.mxu0 %v561
        %565 = vmatprep.subr.bf16.mxu0 0
        %566 = vmatpush1.bf16.msra.mxu0 0
        %567 = vmatprep.subr.bf16.mxu0 0
        %568 = vmatpush1.bf16.msra.mxu0 0
        %569 = vmatprep.subr.bf16.mxu0 0
        %570 = vmatpush1.bf16.msra.mxu0 0
        %571 = vmatprep.subr.bf16.mxu0 0
        %572 = vmatpush1.bf16.msra.mxu0 0
        %573 = vmatprep.subr.bf16.mxu0 0
        %574 = vmatpush1.bf16.msra.mxu0 0
        %575 = vmatprep.subr.bf16.mxu0 0
        %576 = vmatpush1.bf16.msra.mxu0 0
        %577 = vmatprep.subr.bf16.mxu0 0
        %578 = vmatpush1.bf16.msra.mxu0 0
        %579 = vmatprep.subr.bf16.mxu0 0
        %580 = vmatpush1.bf16.msra.mxu0 0
        %581 = vmatprep.subr.bf16.mxu0 0
        %582 = vmatpush1.bf16.msra.mxu0 0
        %583 = vmatprep.subr.bf16.mxu0 0
        %584 = vmatpush1.bf16.msra.mxu0 0
        %585 = vmatprep.subr.bf16.mxu0 0
        %586 = vmatpush1.bf16.msra.mxu0 0
        %587 = vmatprep.subr.bf16.mxu0 0
        %588 = vmatpush1.bf16.msra.mxu0 0
        %589 = vmatprep.subr.bf16.mxu0 0
        %590 = vmatpush1.bf16.msra.mxu0 0
        %591 = vmatprep.subr.bf16.mxu0 0
        %592 = vmatpush1.bf16.msra.mxu0 0
        %593 = vmatprep.subr.bf16.mxu0 0
        %594 = vmatpush1.bf16.msra.mxu0 0
        %595 = vmatprep.mubr.bf16.mxu0 0
        %596 = vmatmul.mubr.bf16.gmra.mrb[0].mxu0 %v557
        %v597 = vpop.f32.mrb[0].mxu0
        %v598 = vadd.f32 0.0, %v597
        %v599 = vpop.f32.mrb[0].mxu0
        %v600 = vpop.f32.mrb[0].mxu0
        %v601 = vpop.f32.mrb[0].mxu0
        %602 = vdwg.mxu0
        %v603 = vpack.c.bf16 %v598, %v598
        %vm604 = vcmask 60416
        %605 = vst.msk [vmem:[#allocation4] sm:$0xf] %vm604, %v603
        %v606 = vld [vmem:[#allocation3] sm:$0xf]
        %v607 = vld [vmem:[#allocation2] sm:$0xf]
        %v609 = vunpack.c.l.b16 %v606
        %v610 = vpack.c.b16 %v609, %v609
        %611 = vrot.lane.b32.xlu0 %v610, 120
        %v612 = vpop.permute.xlu0 %611
        %v614 = vunpack.c.l.b16 %v607
        %v615 = vpack.c.b16 %v614, %v614
        %616 = vrot.lane.b32.xlu0 %v615, 120
        %v617 = vpop.permute.xlu0 %616
        %v619 = vsel %vm492, %v612, 0
        %v622 = vsel %vm492, %v617, 0
        %624 = vmatprep.subr.bf16.mxu0 0
        %625 = vmatpush1.bf16.xpose.msra.mxu0 %v622
        %626 = vmatprep.subr.bf16.mxu0 0
        %627 = vmatpush1.bf16.xpose.msra.mxu0 0
        %628 = vmatprep.subr.bf16.mxu0 0
        %629 = vmatpush1.bf16.xpose.msra.mxu0 0
        %630 = vmatprep.subr.bf16.mxu0 0
        %631 = vmatpush1.bf16.xpose.msra.mxu0 0
        %632 = vmatprep.subr.bf16.mxu0 0
        %633 = vmatpush1.bf16.xpose.msra.mxu0 0
        %634 = vmatprep.subr.bf16.mxu0 0
        %635 = vmatpush1.bf16.xpose.msra.mxu0 0
        %636 = vmatprep.subr.bf16.mxu0 0
        %637 = vmatpush1.bf16.xpose.msra.mxu0 0
        %638 = vmatprep.subr.bf16.mxu0 0
        %639 = vmatpush1.bf16.xpose.msra.mxu0 0
        %640 = vmatprep.subr.bf16.mxu0 0
        %641 = vmatpush1.bf16.xpose.msra.mxu0 0
        %642 = vmatprep.subr.bf16.mxu0 0
        %643 = vmatpush1.bf16.xpose.msra.mxu0 0
        %644 = vmatprep.subr.bf16.mxu0 0
        %645 = vmatpush1.bf16.xpose.msra.mxu0 0
        %646 = vmatprep.subr.bf16.mxu0 0
        %647 = vmatpush1.bf16.xpose.msra.mxu0 0
        %648 = vmatprep.subr.bf16.mxu0 0
        %649 = vmatpush1.bf16.xpose.msra.mxu0 0
        %650 = vmatprep.subr.bf16.mxu0 0
        %651 = vmatpush1.bf16.xpose.msra.mxu0 0
        %652 = vmatprep.subr.bf16.mxu0 0
        %653 = vmatpush1.bf16.xpose.msra.mxu0 0
        %654 = vmatprep.subr.bf16.mxu0 0
        %655 = vmatpush1.bf16.xpose.msra.mxu0 0
        %656 = vmatprep.mubr.bf16.mxu0 0
        %657 = vmatmul.mubr.bf16.gmra.mrb[0].mxu0 %v619
        %v658 = vpop.f32.mrb[0].mxu0
        %v659 = vadd.f32 0.0, %v658
        %v660 = vpop.f32.mrb[0].mxu0
        %v661 = vpop.f32.mrb[0].mxu0
        %v662 = vpop.f32.mrb[0].mxu0
        %663 = vdwg.mxu0
        %v664 = vsel %vm492, %v659, -inf
        %665 = vmax.xlane.f32.xlu0 %v664
        %v666 = vpop.xlane.xlu0 %665
        %v667 = vsub.f32 %v659, %v666
        %v668 = vmul.f32 %v667, 1.442695
        %v669 = vpow.pop %v668
        %v670 = vsel %vm492, %v669, 0.0
        %671 = vadd.xlane.f32.xlu0 %v670
        %v672 = vpop.xlane.xlu0 %671
        %v673 = vrcp.pop %v672
        %v674 = vmul.f32 %v669, %v673
        %v675 = vpack.c.bf16 %v674, %v674
        %676 = vrot.lane.b32.xlu0 %v615, 88
        %v677 = vpop.permute.xlu0 %676
        %v679 = vsel %vm492, %v675, 0
        %v682 = vsel %vm559, %v677, 0
        %684 = vmatprep.subr.bf16.mxu0 0
        %685 = vmatpush1.bf16.msra.mxu0 %v682
        %686 = vmatprep.subr.bf16.mxu0 0
        %687 = vmatpush1.bf16.msra.mxu0 0
        %688 = vmatprep.subr.bf16.mxu0 0
        %689 = vmatpush1.bf16.msra.mxu0 0
        %690 = vmatprep.subr.bf16.mxu0 0
        %691 = vmatpush1.bf16.msra.mxu0 0
        %692 = vmatprep.subr.bf16.mxu0 0
        %693 = vmatpush1.bf16.msra.mxu0 0
        %694 = vmatprep.subr.bf16.mxu0 0
        %695 = vmatpush1.bf16.msra.mxu0 0
        %696 = vmatprep.subr.bf16.mxu0 0
        %697 = vmatpush1.bf16.msra.mxu0 0
        %698 = vmatprep.subr.bf16.mxu0 0
        %699 = vmatpush1.bf16.msra.mxu0 0
        %700 = vmatprep.subr.bf16.mxu0 0
        %701 = vmatpush1.bf16.msra.mxu0 0
        %702 = vmatprep.subr.bf16.mxu0 0
        %703 = vmatpush1.bf16.msra.mxu0 0
        %704 = vmatprep.subr.bf16.mxu0 0
        %705 = vmatpush1.bf16.msra.mxu0 0
        %706 = vmatprep.subr.bf16.mxu0 0
        %707 = vmatpush1.bf16.msra.mxu0 0
        %708 = vmatprep.subr.bf16.mxu0 0
        %709 = vmatpush1.bf16.msra.mxu0 0
        %710 = vmatprep.subr.bf16.mxu0 0
        %711 = vmatpush1.bf16.msra.mxu0 0
        %712 = vmatprep.subr.bf16.mxu0 0
        %713 = vmatpush1.bf16.msra.mxu0 0
        %714 = vmatprep.subr.bf16.mxu0 0
        %715 = vmatpush1.bf16.msra.mxu0 0
        %716 = vmatprep.mubr.bf16.mxu0 0
        %717 = vmatmul.mubr.bf16.gmra.mrb[0].mxu0 %v679
        %v718 = vpop.f32.mrb[0].mxu0
        %v719 = vadd.f32 0.0, %v718
        %v720 = vpop.f32.mrb[0].mxu0
        %v721 = vpop.f32.mrb[0].mxu0
        %v722 = vpop.f32.mrb[0].mxu0
        %723 = vdwg.mxu0
        %v724 = vpack.c.bf16 %v719, %v719
        %v726 = vunpack.c.l.b16 %v724
        %v727 = vpack.c.b16 %v726, %v726
        %728 = vrot.lane.b32.xlu0 %v727, 8
        %v729 = vpop.permute.xlu0 %728
        %vm731 = vcmask 126016
        %732 = vst.msk [vmem:[#allocation4] sm:$0xf] %vm731, %v729
        %v733 = vld [vmem:[#allocation3] sm:$0xf]
        %v734 = vld [vmem:[#allocation2] sm:$0xf]
        %v736 = vunpack.c.l.b16 %v733
        %v737 = vpack.c.b16 %v736, %v736
        %738 = vrot.lane.b32.xlu0 %v737, 112
        %v739 = vpop.permute.xlu0 %738
        %v741 = vunpack.c.l.b16 %v734
        %v742 = vpack.c.b16 %v741, %v741
        %743 = vrot.lane.b32.xlu0 %v742, 112
        %v744 = vpop.permute.xlu0 %743
        %v746 = vsel %vm492, %v739, 0
        %v749 = vsel %vm492, %v744, 0
        %751 = vmatprep.subr.bf16.mxu0 0
        %752 = vmatpush1.bf16.xpose.msra.mxu0 %v749
        %753 = vmatprep.subr.bf16.mxu0 0
        %754 = vmatpush1.bf16.xpose.msra.mxu0 0
        %755 = vmatprep.subr.bf16.mxu0 0
        %756 = vmatpush1.bf16.xpose.msra.mxu0 0
        %757 = vmatprep.subr.bf16.mxu0 0
        %758 = vmatpush1.bf16.xpose.msra.mxu0 0
        %759 = vmatprep.subr.bf16.mxu0 0
        %760 = vmatpush1.bf16.xpose.msra.mxu0 0
        %761 = vmatprep.subr.bf16.mxu0 0
        %762 = vmatpush1.bf16.xpose.msra.mxu0 0
        %763 = vmatprep.subr.bf16.mxu0 0
        %764 = vmatpush1.bf16.xpose.msra.mxu0 0
        %765 = vmatprep.subr.bf16.mxu0 0
        %766 = vmatpush1.bf16.xpose.msra.mxu0 0
        %767 = vmatprep.subr.bf16.mxu0 0
        %768 = vmatpush1.bf16.xpose.msra.mxu0 0
        %769 = vmatprep.subr.bf16.mxu0 0
        %770 = vmatpush1.bf16.xpose.msra.mxu0 0
        %771 = vmatprep.subr.bf16.mxu0 0
        %772 = vmatpush1.bf16.xpose.msra.mxu0 0
        %773 = vmatprep.subr.bf16.mxu0 0
        %774 = vmatpush1.bf16.xpose.msra.mxu0 0
        %775 = vmatprep.subr.bf16.mxu0 0
        %776 = vmatpush1.bf16.xpose.msra.mxu0 0
        %777 = vmatprep.subr.bf16.mxu0 0
        %778 = vmatpush1.bf16.xpose.msra.mxu0 0
        %779 = vmatprep.subr.bf16.mxu0 0
        %780 = vmatpush1.bf16.xpose.msra.mxu0 0
        %781 = vmatprep.subr.bf16.mxu0 0
        %782 = vmatpush1.bf16.xpose.msra.mxu0 0
        %783 = vmatprep.mubr.bf16.mxu0 0
        %784 = vmatmul.mubr.bf16.gmra.mrb[0].mxu0 %v746
        %v785 = vpop.f32.mrb[0].mxu0
        %v786 = vadd.f32 0.0, %v785
        %v787 = vpop.f32.mrb[0].mxu0
        %v788 = vpop.f32.mrb[0].mxu0
        %v789 = vpop.f32.mrb[0].mxu0
        %790 = vdwg.mxu0
        %v791 = vsel %vm492, %v786, -inf
        %792 = vmax.xlane.f32.xlu0 %v791
        %v793 = vpop.xlane.xlu0 %792
        %v794 = vsub.f32 %v786, %v793
        %v795 = vmul.f32 %v794, 1.442695
        %v796 = vpow.pop %v795
        %v797 = vsel %vm492, %v796, 0.0
        %798 = vadd.xlane.f32.xlu0 %v797
        %v799 = vpop.xlane.xlu0 %798
        %v800 = vrcp.pop %v799
        %v801 = vmul.f32 %v796, %v800
        %v802 = vpack.c.bf16 %v801, %v801
        %803 = vrot.lane.b32.xlu0 %v742, 80
        %v804 = vpop.permute.xlu0 %803
        %v806 = vsel %vm492, %v802, 0
        %v809 = vsel %vm559, %v804, 0
        %811 = vmatprep.subr.bf16.mxu0 0
        %812 = vmatpush1.bf16.msra.mxu0 %v809
        %813 = vmatprep.subr.bf16.mxu0 0
        %814 = vmatpush1.bf16.msra.mxu0 0
        %815 = vmatprep.subr.bf16.mxu0 0
        %816 = vmatpush1.bf16.msra.mxu0 0
        %817 = vmatprep.subr.bf16.mxu0 0
        %818 = vmatpush1.bf16.msra.mxu0 0
        %819 = vmatprep.subr.bf16.mxu0 0
        %820 = vmatpush1.bf16.msra.mxu0 0
        %821 = vmatprep.subr.bf16.mxu0 0
        %822 = vmatpush1.bf16.msra.mxu0 0
        %823 = vmatprep.subr.bf16.mxu0 0
        %824 = vmatpush1.bf16.msra.mxu0 0
        %825 = vmatprep.subr.bf16.mxu0 0
        %826 = vmatpush1.bf16.msra.mxu0 0
        %827 = vmatprep.subr.bf16.mxu0 0
        %828 = vmatpush1.bf16.msra.mxu0 0
        %829 = vmatprep.subr.bf16.mxu0 0
        %830 = vmatpush1.bf16.msra.mxu0 0
        %831 = vmatprep.subr.bf16.mxu0 0
        %832 = vmatpush1.bf16.msra.mxu0 0
        %833 = vmatprep.subr.bf16.mxu0 0
        %834 = vmatpush1.bf16.msra.mxu0 0
        %835 = vmatprep.subr.bf16.mxu0 0
        %836 = vmatpush1.bf16.msra.mxu0 0
        %837 = vmatprep.subr.bf16.mxu0 0
        %838 = vmatpush1.bf16.msra.mxu0 0
        %839 = vmatprep.subr.bf16.mxu0 0
        %840 = vmatpush1.bf16.msra.mxu0 0
        %841 = vmatprep.subr.bf16.mxu0 0
        %842 = vmatpush1.bf16.msra.mxu0 0
        %843 = vmatprep.mubr.bf16.mxu0 0
        %844 = vmatmul.mubr.bf16.gmra.mrb[0].mxu0 %v806
        %v845 = vpop.f32.mrb[0].mxu0
        %v846 = vadd.f32 0.0, %v845
        %v847 = vpop.f32.mrb[0].mxu0
        %v848 = vpop.f32.mrb[0].mxu0
        %v849 = vpop.f32.mrb[0].mxu0
        %850 = vdwg.mxu0
        %v851 = vpack.c.bf16 %v846, %v846
        %v853 = vunpack.c.l.b16 %v851
        %v854 = vpack.c.b16 %v853, %v853
        %855 = vrot.lane.b32.xlu0 %v854, 16
        %v856 = vpop.permute.xlu0 %855
        %vm858 = vcmask 191616
        %859 = vst.msk [vmem:[#allocation4] sm:$0xf] %vm858, %v856
        %v860 = vld [vmem:[#allocation3] sm:$0xf]
        %v861 = vld [vmem:[#allocation2] sm:$0xf]
        %v863 = vunpack.c.l.b16 %v860
        %v864 = vpack.c.b16 %v863, %v863
        %865 = vrot.lane.b32.xlu0 %v864, 104
        %v866 = vpop.permute.xlu0 %865
        %v868 = vunpack.c.l.b16 %v861
        %v869 = vpack.c.b16 %v868, %v868
        %870 = vrot.lane.b32.xlu0 %v869, 104
        %v871 = vpop.permute.xlu0 %870
        %v873 = vsel %vm492, %v866, 0
        %v876 = vsel %vm492, %v871, 0
        %878 = vmatprep.subr.bf16.mxu0 0
        %879 = vmatpush1.bf16.xpose.msra.mxu0 %v876
        %880 = vmatprep.subr.bf16.mxu0 0
        %881 = vmatpush1.bf16.xpose.msra.mxu0 0
        %882 = vmatprep.subr.bf16.mxu0 0
        %883 = vmatpush1.bf16.xpose.msra.mxu0 0
        %884 = vmatprep.subr.bf16.mxu0 0
        %885 = vmatpush1.bf16.xpose.msra.mxu0 0
        %886 = vmatprep.subr.bf16.mxu0 0
        %887 = vmatpush1.bf16.xpose.msra.mxu0 0
        %888 = vmatprep.subr.bf16.mxu0 0
        %889 = vmatpush1.bf16.xpose.msra.mxu0 0
        %890 = vmatprep.subr.bf16.mxu0 0
        %891 = vmatpush1.bf16.xpose.msra.mxu0 0
        %892 = vmatprep.subr.bf16.mxu0 0
        %893 = vmatpush1.bf16.xpose.msra.mxu0 0
        %894 = vmatprep.subr.bf16.mxu0 0
        %895 = vmatpush1.bf16.xpose.msra.mxu0 0
        %896 = vmatprep.subr.bf16.mxu0 0
        %897 = vmatpush1.bf16.xpose.msra.mxu0 0
        %898 = vmatprep.subr.bf16.mxu0 0
        %899 = vmatpush1.bf16.xpose.msra.mxu0 0
        %900 = vmatprep.subr.bf16.mxu0 0
        %901 = vmatpush1.bf16.xpose.msra.mxu0 0
        %902 = vmatprep.subr.bf16.mxu0 0
        %903 = vmatpush1.bf16.xpose.msra.mxu0 0
        %904 = vmatprep.subr.bf16.mxu0 0
        %905 = vmatpush1.bf16.xpose.msra.mxu0 0
        %906 = vmatprep.subr.bf16.mxu0 0
        %907 = vmatpush1.bf16.xpose.msra.mxu0 0
        %908 = vmatprep.subr.bf16.mxu0 0
        %909 = vmatpush1.bf16.xpose.msra.mxu0 0
        %910 = vmatprep.mubr.bf16.mxu0 0
        %911 = vmatmul.mubr.bf16.gmra.mrb[0].mxu0 %v873
        %v912 = vpop.f32.mrb[0].mxu0
        %v913 = vadd.f32 0.0, %v912
        %v914 = vpop.f32.mrb[0].mxu0
        %v915 = vpop.f32.mrb[0].mxu0
        %v916 = vpop.f32.mrb[0].mxu0
        %917 = vdwg.mxu0
        %v918 = vsel %vm492, %v913, -inf
        %919 = vmax.xlane.f32.xlu0 %v918
        %v920 = vpop.xlane.xlu0 %919
        %v921 = vsub.f32 %v913, %v920
        %v922 = vmul.f32 %v921, 1.442695
        %v923 = vpow.pop %v922
        %v924 = vsel %vm492, %v923, 0.0
        %925 = vadd.xlane.f32.xlu0 %v924
        %v926 = vpop.xlane.xlu0 %925
        %v927 = vrcp.pop %v926
        %v928 = vmul.f32 %v923, %v927
        %v929 = vpack.c.bf16 %v928, %v928
        %930 = vrot.lane.b32.xlu0 %v869, 72
        %v931 = vpop.permute.xlu0 %930
        %v933 = vsel %vm492, %v929, 0
        %v936 = vsel %vm559, %v931, 0
        %938 = vmatprep.subr.bf16.mxu0 0
        %939 = vmatpush1.bf16.msra.mxu0 %v936
        %940 = vmatprep.subr.bf16.mxu0 0
        %941 = vmatpush1.bf16.msra.mxu0 0
        %942 = vmatprep.subr.bf16.mxu0 0
        %943 = vmatpush1.bf16.msra.mxu0 0
        %944 = vmatprep.subr.bf16.mxu0 0
        %945 = vmatpush1.bf16.msra.mxu0 0
        %946 = vmatprep.subr.bf16.mxu0 0
        %947 = vmatpush1.bf16.msra.mxu0 0
        %948 = vmatprep.subr.bf16.mxu0 0
        %949 = vmatpush1.bf16.msra.mxu0 0
        %950 = vmatprep.subr.bf16.mxu0 0
        %951 = vmatpush1.bf16.msra.mxu0 0
        %952 = vmatprep.subr.bf16.mxu0 0
        %953 = vmatpush1.bf16.msra.mxu0 0
        %954 = vmatprep.subr.bf16.mxu0 0
        %955 = vmatpush1.bf16.msra.mxu0 0
        %956 = vmatprep.subr.bf16.mxu0 0
        %957 = vmatpush1.bf16.msra.mxu0 0
        %958 = vmatprep.subr.bf16.mxu0 0
        %959 = vmatpush1.bf16.msra.mxu0 0
        %960 = vmatprep.subr.bf16.mxu0 0
        %961 = vmatpush1.bf16.msra.mxu0 0
        %962 = vmatprep.subr.bf16.mxu0 0
        %963 = vmatpush1.bf16.msra.mxu0 0
        %964 = vmatprep.subr.bf16.mxu0 0
        %965 = vmatpush1.bf16.msra.mxu0 0
        %966 = vmatprep.subr.bf16.mxu0 0
        %967 = vmatpush1.bf16.msra.mxu0 0
        %968 = vmatprep.subr.bf16.mxu0 0
        %969 = vmatpush1.bf16.msra.mxu0 0
        %970 = vmatprep.mubr.bf16.mxu0 0
        %971 = vmatmul.mubr.bf16.gmra.mrb[0].mxu0 %v933
        %v972 = vpop.f32.mrb[0].mxu0
        %v973 = vadd.f32 0.0, %v972
        %v974 = vpop.f32.mrb[0].mxu0
        %v975 = vpop.f32.mrb[0].mxu0
        %v976 = vpop.f32.mrb[0].mxu0
        %977 = vdwg.mxu0
        %v978 = vpack.c.bf16 %v973, %v973
        %v980 = vunpack.c.l.b16 %v978
        %v981 = vpack.c.b16 %v980, %v980
        %982 = vrot.lane.b32.xlu0 %v981, 24
        %v983 = vpop.permute.xlu0 %982
        %vm985 = vcmask 257216
        %986 = vst.msk [vmem:[#allocation4] sm:$0xf] %vm985, %v983
        %v987 = vld [vmem:[#allocation4] sm:$0xf]
        %v988 = vld [vmem:[%s5] sm:$0xf]
        %v989 = vld [vmem:[%s5 + $0x4] sm:$0xf]
        %v990 = vld [vmem:[%s5 + $0x8] sm:$0xf]
        %v991 = vld [vmem:[%s5 + $0xc] sm:$0xf]
        %v992 = vld [vmem:[%s6] sm:$0x1]
        %v994 = vlaneseq
        %v995 = vshrl.u32 %v994, 7
        %v996 = vsub.s32 0, %v995
        %v997 = vrot.slane %v992, %v996
        %v1003 = vunpack.c.l.b16 %v988
        %v1004 = vunpack.c.l.b16 %v989
        %v1005 = vunpack.c.l.b16 %v990
        %v1006 = vunpack.c.l.b16 %v991
        %v1007 = vpack.c.b16 %v1004, %v1003
        %v1008 = vpack.c.b16 %v1006, %v1005
        %v1012 = vsel %vm442, %v987, 0
        %1014 = vmatprep.subr.bf16.mxu0 0
        %1015 = vmatpush1.bf16.msra.mxu0 %v1007
        %1016 = vmatprep.subr.bf16.mxu0 0
        %1017 = vmatpush1.bf16.msra.mxu0 %v1008
        %1018 = vmatprep.subr.bf16.mxu0 0
        %1019 = vmatpush1.bf16.msra.mxu0 0
        %1020 = vmatprep.subr.bf16.mxu0 0
        %1021 = vmatpush1.bf16.msra.mxu0 0
        %1022 = vmatprep.subr.bf16.mxu0 0
        %1023 = vmatpush1.bf16.msra.mxu0 0
        %1024 = vmatprep.subr.bf16.mxu0 0
        %1025 = vmatpush1.bf16.msra.mxu0 0
        %1026 = vmatprep.subr.bf16.mxu0 0
        %1027 = vmatpush1.bf16.msra.mxu0 0
        %1028 = vmatprep.subr.bf16.mxu0 0
        %1029 = vmatpush1.bf16.msra.mxu0 0
        %1030 = vmatprep.subr.bf16.mxu0 0
        %1031 = vmatpush1.bf16.msra.mxu0 0
        %1032 = vmatprep.subr.bf16.mxu0 0
        %1033 = vmatpush1.bf16.msra.mxu0 0
        %1034 = vmatprep.subr.bf16.mxu0 0
        %1035 = vmatpush1.bf16.msra.mxu0 0
        %1036 = vmatprep.subr.bf16.mxu0 0
        %1037 = vmatpush1.bf16.msra.mxu0 0
        %1038 = vmatprep.subr.bf16.mxu0 0
        %1039 = vmatpush1.bf16.msra.mxu0 0
        %1040 = vmatprep.subr.bf16.mxu0 0
        %1041 = vmatpush1.bf16.msra.mxu0 0
        %1042 = vmatprep.subr.bf16.mxu0 0
        %1043 = vmatpush1.bf16.msra.mxu0 0
        %1044 = vmatprep.subr.bf16.mxu0 0
        %1045 = vmatpush1.bf16.msra.mxu0 0
        %1046 = vmatprep.mubr.bf16.mxu0 0
        %1047 = vmatmul.mubr.bf16.gmra.mrb[0].mxu0 %v1012
        %v1048 = vpop.f32.mrb[0].mxu0
        %v1049 = vadd.f32 %v997, %v1048
        %v1050 = vpop.f32.mrb[0].mxu0
        %v1051 = vpop.f32.mrb[0].mxu0
        %v1052 = vpop.f32.mrb[0].mxu0
        %1053 = vdwg.mxu0
        %1054 = vst.msk [vmem:[%s336] sm:$0xff] %vm442, %v1049
        %s1055 = sand.u32 %s199, 1
        %s1056 = scalar_lea.sflag [#allocation7], %s1055
        %s1057 = sand.u32 %s199, 1
        %s1058 = smul.addr %s1057, 8
        %s1059 = scalar_lea.vmem [#allocation11], %s1058
        // Predicated region
        $region65: #{tpu_custom_call.1} parent=47 // pred_check
          %p1060 = pneg %p209
        $region66: #{tpu_custom_call.1} parent=47 // pred_check_branch
          %1062 = sbr.rel (%p1060) target = $region68
        $region67: #{tpu_custom_call.1} parent=47 // pred_region
          %s1064 = ssub.s32 128, 128
          %1065 = vsyncadd %s1056, %s1064
          %s1066 = sadd.s32 %s30, %s29
          %s1067 = smul.addr %s1066, 128
          %s1068 = scalar_lea.hbm %s7, %s1067
          %s1070 = sshll.u32 %s1059, 4
          %s1071 = int_to_ptr.vmem [resolvable:$true] %s1070
          %1073 = dma.vmem_to_hbm [thread:$0]  %s1071, 128, %s1068, %s1056
        $region68: #{tpu_custom_call.1} parent=47 // pred_fallthru
          _
      $region48: #{tpu_custom_call.1} parent=5 // pred_fallthru
        _
      %p1074 = scmp.le.s32.totalorder 2, %s20
      // Predicated region
      $region69: #{tpu_custom_call.1} parent=5 // pred_check
        %p1075 = pneg %p1074
      $region70: #{tpu_custom_call.1} parent=5 // pred_check_branch
        %1077 = sbr.rel (%p1075) target = $region72
      $region71: #{tpu_custom_call.1} parent=5 // pred_region
        %s1078 = ssub.s32 %s20, 2
        // Predicated region
        $region73: #{tpu_custom_call.1} parent=71 // pred_check
          %p1079 = pneg %p215
        $region74: #{tpu_custom_call.1} parent=71 // pred_check_branch
          %1081 = sbr.rel (%p1079) target = $region76
        $region75: #{tpu_custom_call.1} parent=71 // pred_region
          %s1082 = sand.u32 %s200, 1
          %s1083 = scalar_lea.sflag [#allocation7], %s1082
          %s1084 = sand.u32 %s200, 1
          %s1085 = smul.addr %s1084, 8
          %s1086 = scalar_lea.vmem [#allocation11], %s1085
          %1087 = dma.done %s1083, 128
        $region76: #{tpu_custom_call.1} parent=71 // pred_fallthru
          _
      $region72: #{tpu_custom_call.1} parent=5 // pred_fallthru
        _
    $region6: #{tpu_custom_call.1} parent=1 // loop_footer
      %s24 = sadd.s32 1, %s20
    $region7: #{tpu_custom_call.1} parent=1 // loop_footer_branch
      %19 = sbr.rel target = $region3
    $region8: #{tpu_custom_call.1} parent=1 // loop_exit
      _
    %1088 = vsyncpa [#allocation6], 1
    %s1089 = scalar_lea.sflag [#allocation6], 1
    %1090 = vsyncpa %s1089, 1
    %1091 = vsyncpa [#allocation9], 1
    %1092 = vsyncpa [#allocation7], 1
    %s1093 = scalar_lea.sflag [#allocation7], 1
    %1094 = vsyncpa %s1093, 1

</llo_original>
